<compile_context>
chip_gen: v6e
topology: v6e:2x2x1
jax: 0.10.0
libtpu: 0.0.40
codegen_flags: <defaults>
</compile_context>

<pallas_src>
import functools

import jax
import jax.numpy as jnp
from jax import lax
from jax.experimental import pallas as pl
from jax.experimental.pallas import tpu as pltpu

_LANES = 128
_SUBLANES = 8
_TARGET_BLOCK_BYTES = 2 * 1024 * 1024   # ~2 MiB of DMA per input per grid step


def _cdiv(a, b):
    return -(-a // b)


def _tile_partial_sum(vals, tile_rows):
    """(tile_rows, 128) f32 -> (1, 128) partial sum.

    When tile_rows is 8-aligned, first collapse with pure vreg-shaped VPU adds,
    then finish with a single cross-sublane (XLU) reduce; the XLU slot is free
    under the DMA/VPU for this memory-bound kernel.
    """
    if tile_rows % _SUBLANES == 0 and tile_rows > _SUBLANES:
        vals = jnp.sum(vals.reshape(-1, _SUBLANES, _LANES), axis=0)
    return jnp.sum(vals, axis=0, keepdims=True)


def _mse_partial_kernel(x_ref, y_ref, o_ref, *, rows, tile_rows, need_row_mask):
    """One grid step: o_ref[0] = (1, 128) partial sum of (x-y)^2 over this tile."""
    d = x_ref[...].astype(jnp.float32) - y_ref[...].astype(jnp.float32)
    dd = d * d

    if not need_row_mask:
        o_ref[0] = _tile_partial_sum(dd, tile_rows)
    else:
        is_last = pl.program_id(0) == pl.num_programs(0) - 1

        @pl.when(jnp.logical_not(is_last))
        def _():
            o_ref[0] = _tile_partial_sum(dd, tile_rows)

        @pl.when(is_last)
        def _():
            # The last tile extends past the real array; rows beyond `rows`
            # hold undefined edge-padding data -> zero them before summing.
            row_start = pl.program_id(0) * tile_rows
            row_ids = row_start + lax.broadcasted_iota(
                jnp.int32, (tile_rows, _LANES), 0)
            o_ref[0] = _tile_partial_sum(
                jnp.where(row_ids < rows, dd, 0.0), tile_rows)


def _choose_tiling(rows, itemsize):
    """Byte-targeted, dtype-aware tile sizing. Returns (tile_rows, num_blocks)."""
    max_tile = max(
        _SUBLANES,
        (_TARGET_BLOCK_BYTES // (_LANES * itemsize)) // _SUBLANES * _SUBLANES)
    if rows <= 512:
        return rows, 1                      # single full-extent block is legal
    # >= 2 blocks (even count) so both v7x TensorCores get balanced work.
    num_blocks = max(2, _cdiv(rows, max_tile))
    if num_blocks % 2:
        num_blocks += 1
    tile_rows = _cdiv(_cdiv(rows, num_blocks), _SUBLANES) * _SUBLANES
    return tile_rows, _cdiv(rows, tile_rows)


def my_loss(x, y, *, min_pallas_elems=65536):
    """MSE loss mean((x - y)**2) over all elements, returned as an f32 scalar."""
    assert x.shape == y.shape, "x and y must have the same shape"
    n_elems = x.size

    # Fast path: tiny arrays (custom-call launch overhead dominates) or element
    # counts not 128-aligned (a lane-dense view would require a padding/slicing
    # HBM copy of both inputs; fused XLA reads each input exactly once instead).
    if n_elems < min_pallas_elems or n_elems % _LANES != 0:
        d = x.astype(jnp.float32) - y.astype(jnp.float32)
        return jnp.mean(d * d)

    rows = n_elems // _LANES
    # Free (metadata-only) reshape of the contiguous inputs -- no HBM copy.
    x2d = jnp.reshape(x, (rows, _LANES))
    y2d = jnp.reshape(y, (rows, _LANES))

    itemsize = max(x.dtype.itemsize, y.dtype.itemsize)
    tile_rows, num_blocks = _choose_tiling(rows, itemsize)
    need_row_mask = (rows % tile_rows) != 0

    kernel = functools.partial(
        _mse_partial_kernel,
        rows=rows,
        tile_rows=tile_rows,
        need_row_mask=need_row_mask,
    )

    in_bytes = n_elems * (x.dtype.itemsize + y.dtype.itemsize)
    out_bytes = num_blocks * _LANES * 4
    cost = pl.CostEstimate(
        flops=3 * n_elems,              # sub, mul, add per element
        transcendentals=0,
        bytes_accessed=in_bytes + out_bytes,
    )

    partials = pl.pallas_call(
        kernel,
        out_shape=jax.ShapeDtypeStruct((num_blocks, 1, _LANES), jnp.float32),
        grid_spec=pltpu.PrefetchScalarGridSpec(
            num_scalar_prefetch=0,
            grid=(num_blocks,),
            in_specs=[
                pl.BlockSpec((tile_rows, _LANES), lambda i: (i, 0)),
                pl.BlockSpec((tile_rows, _LANES), lambda i: (i, 0)),
            ],
            out_specs=pl.BlockSpec((1, 1, _LANES), lambda i: (i, 0, 0)),
        ),
        compiler_params=pltpu.CompilerParams(
            # Every grid step is independent -> megacore split on v7x.
            dimension_semantics=("parallel",),
        ),
        cost_estimate=cost,
    )(x2d, y2d)

    # Single tiny final cross-lane reduce + divide by the true element count.
    return jnp.sum(partials) / jnp.float32(n_elems)


if __name__ == "__main__":
    key = jax.random.PRNGKey(0)
    kx, ky = jax.random.split(key)
    # Small NCHW-like shapes consistent with the distillation-loss usage.
    x = jax.random.normal(kx, (2, 4, 16, 16), dtype=jnp.float32)
    y = jax.random.normal(ky, (2, 4, 16, 16), dtype=jnp.float32)

    # Force the Pallas path even at this small demo size so the kernel is
    # exercised; production callers keep the default small-input fast path.
    loss = jax.block_until_ready(my_loss(x, y, min_pallas_elems=0))

    # Reference check against plain JAX (same semantics as the intended
    # torch.mean(torch.pow(x - y, 2))).
    ref = jnp.mean((x - y) ** 2)
    assert jnp.allclose(loss, ref, rtol=1e-5, atol=1e-6), (loss, ref)

    print("KERNEL_OK")
</pallas_src>

<mosaic_0001>
module attributes {stable_mosaic.version = 11 : i64} {
  func.func @_mse_partial_kernel(%arg0: i32, %arg1: memref<16x128xf32, #tpu.memory_space<vmem>>, %arg2: memref<16x128xf32, #tpu.memory_space<vmem>>, %arg3: memref<1x1x128xf32, #tpu.memory_space<vmem>>) attributes {dimension_semantics = [#tpu.dimension_semantics<parallel>], iteration_bounds = array<i64: 1>, scalar_prefetch = 0 : i64, scratch_operands = 0 : i64, tpu.core_type = #tpu.core_type<tc>, window_params = [{transform_indices = @transform_0, window_bounds = array<i64: 16, 128>}, {transform_indices = @transform_1, window_bounds = array<i64: 16, 128>}, {transform_indices = @transform_2, window_bounds = array<i64: 1, 1, 128>}]} {
    %c0 = arith.constant 0 : index
    %c0_0 = arith.constant 0 : index
    %0 = vector.load %arg1[%c0, %c0_0] : memref<16x128xf32, #tpu.memory_space<vmem>>, vector<16x128xf32>
    %c0_1 = arith.constant 0 : index
    %c0_2 = arith.constant 0 : index
    %1 = vector.load %arg2[%c0_1, %c0_2] : memref<16x128xf32, #tpu.memory_space<vmem>>, vector<16x128xf32>
    %2 = arith.subf %0, %1 : vector<16x128xf32>
    %3 = arith.mulf %2, %2 : vector<16x128xf32>
    %4 = vector.shape_cast %3 : vector<16x128xf32> to vector<2x8x128xf32>
    %cst = arith.constant dense<0.000000e+00> : vector<8x128xf32>
    %5 = vector.multi_reduction <add>, %4, %cst [0] : vector<2x8x128xf32> to vector<8x128xf32>
    %cst_3 = arith.constant dense<0.000000e+00> : vector<128xf32>
    %6 = vector.multi_reduction <add>, %5, %cst_3 [0] : vector<8x128xf32> to vector<128xf32>
    %7 = vector.shape_cast %6 : vector<128xf32> to vector<1x128xf32>
    %c0_4 = arith.constant 0 : index
    %c0_5 = arith.constant 0 : index
    %c0_6 = arith.constant 0 : index
    %8 = vector.load %arg3[%c0_4, %c0_5, %c0_6] : memref<1x1x128xf32, #tpu.memory_space<vmem>>, vector<1x1x128xf32>
    %9 = vector.shape_cast %8 : vector<1x1x128xf32> to vector<1x128xf32>
    %10 = vector.shape_cast %7 : vector<1x128xf32> to vector<1x1x128xf32>
    tpu.vector_store %arg3[%c0_4, %c0_5, %c0_6], %10 {strides = array<i32>} : memref<1x1x128xf32, #tpu.memory_space<vmem>>, vector<1x1x128xf32>,
    return
  }
  func.func @transform_0(%arg0: i32) -> (i32, i32) {
    %c0_i32 = arith.constant 0 : i32
    %c0_i32_0 = arith.constant 0 : i32
    return %arg0, %c0_i32 : i32, i32
  }
  func.func @transform_1(%arg0: i32) -> (i32, i32) {
    %c0_i32 = arith.constant 0 : i32
    %c0_i32_0 = arith.constant 0 : i32
    return %arg0, %c0_i32 : i32, i32
  }
  func.func @transform_2(%arg0: i32) -> (i32, i32, i32) {
    %c0_i32 = arith.constant 0 : i32
    %c0_i32_0 = arith.constant 0 : i32
    %c0_i32_1 = arith.constant 0 : i32
    return %arg0, %c0_i32, %c0_i32_0 : i32, i32, i32
  }
}

</mosaic_0001>

<llo_original>
// kernel: tpu_custom_call.1
$region0: #{tpu_custom_call.1}
  #allocation0 [shape = 'u32[]', space=smem, size = 0x4, offset = 0x4, fixed_abs, tag = 'smem constant byte address 0x4 - core index']
  #allocation1 [shape = 'u32[144,128]{1,0:T(1,128)}', space=vmem, size = 0x12000, scoped, tag = 'internal scratch']
  %s0 = inlined_call_operand.hbm [shape: f32[16,128], index: 0, kind: input, shape index: {}]
  %s1 = inlined_call_operand.hbm [shape: f32[16,128], index: 1, kind: input, shape index: {}]
  %s2 = inlined_call_operand.hbm [shape: f32[1,1,128], index: 2, kind: output, shape index: {}]
  %s3 = sld [smem:[#allocation0]]
  $region26: #{tpu_custom_call.1} parent=0
    _
  %s5 = ssub.s32 1, %s3
  %s6 = scalar_select 0, %s5, %s3
  $region1: #{tpu_custom_call.1} parent=0
    #allocation2 [shape = 'u8[8192]{0}', space=vmem, size = 0x2000, scoped, tag = 'input window, operand 0, single buffered']
    #allocation3 [shape = 's32[1]{0}', space=sflag, size = 0x4, scoped, tag = 'scoped memory for tpu_custom_call.1']
    #allocation4 [shape = 's32[1]{0}', space=sflag, size = 0x4, scoped, tag = 'scoped memory for tpu_custom_call.1']
    #allocation5 [shape = 'u8[8192]{0}', space=vmem, size = 0x2000, scoped, tag = 'input window, operand 1, single buffered']
    #allocation6 [shape = 's32[1]{0}', space=sflag, size = 0x4, scoped, tag = 'scoped memory for tpu_custom_call.1']
    #allocation7 [shape = 'u8[512]{0}', space=vmem, size = 0x400, scoped, tag = 'output window, operand 0, single buffered']
    %7 = vsyncpa [#allocation3], 0
    %8 = vsyncpa [#allocation6], 0
    %9 = vsyncpa [#allocation4], 0
    // Predicated region
    $region2: #{tpu_custom_call.1} parent=1 // pred_check
      _
    $region3: #{tpu_custom_call.1} parent=1 // pred_check_branch
      %11 = sbr.rel (0) target = $region5
    $region4: #{tpu_custom_call.1} parent=1 // pred_region
      %s13 = ssub.s32 256, 256
      %14 = vsyncadd [#allocation3], %s13
      %s15 = sshll.u32 [#allocation2], 4
      %s16 = int_to_ptr.vmem [resolvable:$true] %s15
      %21 = dma.hbm_to_vmem [thread:$0]  %s0, 256, %s16, [#allocation3], 128, 128, 8
    $region5: #{tpu_custom_call.1} parent=1 // pred_fallthru
      _
    // Predicated region
    $region6: #{tpu_custom_call.1} parent=1 // pred_check
      _
    $region7: #{tpu_custom_call.1} parent=1 // pred_check_branch
      %23 = sbr.rel (0) target = $region9
    $region8: #{tpu_custom_call.1} parent=1 // pred_region
      %s25 = ssub.s32 256, 256
      %26 = vsyncadd [#allocation6], %s25
      %s27 = sshll.u32 [#allocation5], 4
      %s28 = int_to_ptr.vmem [resolvable:$true] %s27
      %33 = dma.hbm_to_vmem [thread:$0]  %s1, 256, %s28, [#allocation6], 128, 128, 8
    $region9: #{tpu_custom_call.1} parent=1 // pred_fallthru
      _
    // Predicated region
    $region10: #{tpu_custom_call.1} parent=1 // pred_check
      _
    $region11: #{tpu_custom_call.1} parent=1 // pred_check_branch
      %35 = sbr.rel (0) target = $region13
    $region12: #{tpu_custom_call.1} parent=1 // pred_region
      %36 = dma.done [#allocation3], 256
    $region13: #{tpu_custom_call.1} parent=1 // pred_fallthru
      _
    // Predicated region
    $region14: #{tpu_custom_call.1} parent=1 // pred_check
      _
    $region15: #{tpu_custom_call.1} parent=1 // pred_check_branch
      %38 = sbr.rel (0) target = $region17
    $region16: #{tpu_custom_call.1} parent=1 // pred_region
      %39 = dma.done [#allocation6], 256
    $region17: #{tpu_custom_call.1} parent=1 // pred_fallthru
      _
    %v40 = vld [vmem:[#allocation2] sm:$0xff]
    %v41 = vld [vmem:[#allocation2 + $0x8] sm:$0xff]
    %v42 = vld [vmem:[#allocation5] sm:$0xff]
    %v43 = vld [vmem:[#allocation5 + $0x8] sm:$0xff]
    %v44 = vsub.f32 %v40, %v42
    %v45 = vsub.f32 %v41, %v43
    %v46 = vmul.f32 %v44, %v44
    %v47 = vmul.f32 %v45, %v45
    %v48 = vadd.f32 %v46, %v47
    %v49 = vrot.slane %v48, 4
    %v50 = vadd.f32 %v48, %v49
    %v51 = vrot.slane %v50, 2
    %v52 = vadd.f32 %v50, %v51
    %v53 = vrot.slane %v52, 1
    %v54 = vadd.f32 %v52, %v53
    %55 = vst [vmem:[#allocation7] sm:$0x1] %v54
    // Predicated region
    $region18: #{tpu_custom_call.1} parent=1 // pred_check
      _
    $region19: #{tpu_custom_call.1} parent=1 // pred_check_branch
      %57 = sbr.rel (0) target = $region21
    $region20: #{tpu_custom_call.1} parent=1 // pred_region
      %s59 = ssub.s32 16, 16
      %60 = vsyncadd [#allocation4], %s59
      %s62 = sshll.u32 [#allocation7], 4
      %s63 = int_to_ptr.vmem [resolvable:$true] %s62
      %65 = dma.vmem_to_hbm [thread:$0]  %s63, 16, %s2, [#allocation4]
    $region21: #{tpu_custom_call.1} parent=1 // pred_fallthru
      _
    // Predicated region
    $region22: #{tpu_custom_call.1} parent=1 // pred_check
      _
    $region23: #{tpu_custom_call.1} parent=1 // pred_check_branch
      %67 = sbr.rel (0) target = $region25
    $region24: #{tpu_custom_call.1} parent=1 // pred_region
      %68 = dma.done [#allocation4], 16
    $region25: #{tpu_custom_call.1} parent=1 // pred_fallthru
      _
    %69 = vsyncpa [#allocation3], 1
    %70 = vsyncpa [#allocation6], 1
    %71 = vsyncpa [#allocation4], 1

</llo_original>
